<compile_context>
chip_gen: v5e
topology: v5e:2x2
jax: 0.10.0
libtpu: 0.0.40
codegen_flags: <defaults>
</compile_context>

<pallas_src>
import math
import functools

import jax
import jax.numpy as jnp
from jax import lax
from jax.experimental import pallas as pl
from jax.experimental.pallas import tpu as pltpu


def _round_up(x, m):
    return ((x + m - 1) // m) * m


def _cdiv(a, b):
    return -(-a // b)


def _mask_kernel_2d(x_ref, w_ref, b_ref, o_ref, *, compute_dtype):
    # x_ref: (Cin, T)    lane axis = pixels, lane-dense
    # w_ref: (Cout, Cin) equalized-lr scale already folded in
    # b_ref: (Cout, 1)   broadcast over the lane axis
    # o_ref: (Cout, T)
    x = x_ref[...]
    w = w_ref[...]
    if compute_dtype is not None:
        x = x.astype(compute_dtype)
        w = w.astype(compute_dtype)
    acc = jnp.dot(w, x, preferred_element_type=jnp.float32)
    o_ref[...] = (acc + b_ref[...]).astype(o_ref.dtype)


def _mask_kernel_batched(x_ref, w_ref, b_ref, o_ref, *, compute_dtype, nb):
    # x_ref: (Nb, Cin, HW), o_ref: (Nb, Cout, HW) -- several images per step.
    w = w_ref[...]
    if compute_dtype is not None:
        w = w.astype(compute_dtype)
    b = b_ref[...]

    def one(i):
        x = x_ref[i]
        if compute_dtype is not None:
            x = x.astype(compute_dtype)
        acc = jnp.dot(w, x, preferred_element_type=jnp.float32)
        o_ref[i] = (acc + b).astype(o_ref.dtype)

    if nb <= 8:
        for i in range(nb):       # small static unroll
            one(i)
    else:
        def body(i, carry):
            one(i)
            return carry
        lax.fori_loop(0, nb, body, 0)


def mask_forward(x_nchw, w_sem, b_sem, w_ins=None, b_ins=None, *,
                 panoptic=True, tile_hw=32768, compute_dtype=None,
                 out_dtype=None):
    """Forward pass of Mask: concat(sem_conv(x), ins_conv(x)) on channels.

    x_nchw: (N, Cin, H, W)
    w_sem: (Cout_sem, Cin, 1, 1), b_sem: (Cout_sem,)
    w_ins: (Cout_ins, Cin, 1, 1), b_ins: (Cout_ins,)  (ignored if not panoptic)
    compute_dtype: optional MXU operand dtype (cast in-kernel; rounds operands,
        accumulation stays f32).  out_dtype: optional output store dtype
        (e.g. bf16) to cut HBM write bytes.  Defaults keep the input dtype.
    Returns (N, Cout_total, H, W).
    """
    N, Cin, H, W = x_nchw.shape
    HW = H * W
    out_dtype = x_nchw.dtype if out_dtype is None else out_dtype

    # EqualizedConv2d runtime weight scaling: scale = gain / sqrt(fan_in), gain=1, k=1.
    scale = 1.0 / math.sqrt(Cin)

    if panoptic:
        w_all = jnp.concatenate([w_sem, w_ins], axis=0)   # (Cout, Cin, 1, 1)
        b_all = jnp.concatenate([b_sem, b_ins], axis=0)   # (Cout,)
    else:
        w_all, b_all = w_sem, b_sem
    Cout = w_all.shape[0]

    w_mat = w_all[:, :, 0, 0].astype(jnp.float32) * scale  # (Cout, Cin), scale folded
    b_col = b_all.astype(jnp.float32).reshape(Cout, 1)     # (Cout, 1)

    # NCHW stays NCHW; merge contiguous spatial dims (free reshape).
    # NOTE: no dtype cast and no padding here -- that would be extra HBM passes.
    x3 = x_nchw.reshape(N, Cin, HW)

    HW_pad = _round_up(HW, 128)
    tile_target = max(128, _round_up(tile_hw, 128))

    # Decide images-per-step (nb) and pixels-per-step (T).
    if HW_pad >= tile_target:
        nb, T = 1, tile_target                              # tile over pixels
    else:
        nb, T = min(N, max(1, tile_target // HW_pad)), HW   # pack images per step

    grid_n = _cdiv(N, nb)
    grid_j = _cdiv(HW, T)

    # v7x has 2 TensorCores: make sure there are >=2 parallel steps if possible.
    if grid_n * grid_j < 2:
        if nb >= 2:                       # split the batch block
            nb = _cdiv(nb, 2)
            grid_n = _cdiv(N, nb)
        elif HW_pad >= 256:               # split spatially (ragged last block OK)
            T = _round_up(_cdiv(HW, 2), 128)
            grid_j = _cdiv(HW, T)

    if nb == 1:
        kernel = functools.partial(_mask_kernel_2d, compute_dtype=compute_dtype)
        grid = (N, grid_j)
        in_specs = [
            pl.BlockSpec((None, Cin, T), lambda n, j: (n, 0, j)),   # activations
            pl.BlockSpec((Cout, Cin), lambda n, j: (0, 0)),         # fused weights
            pl.BlockSpec((Cout, 1), lambda n, j: (0, 0)),           # fused bias
        ]
        out_specs = pl.BlockSpec((None, Cout, T), lambda n, j: (n, 0, j))
        dim_sem = ("parallel", "parallel")
    else:
        kernel = functools.partial(_mask_kernel_batched,
                                   compute_dtype=compute_dtype, nb=nb)
        grid = (grid_n,)
        in_specs = [
            pl.BlockSpec((nb, Cin, T), lambda n: (n, 0, 0)),
            pl.BlockSpec((Cout, Cin), lambda n: (0, 0)),
            pl.BlockSpec((Cout, 1), lambda n: (0, 0)),
        ]
        out_specs = pl.BlockSpec((nb, Cout, T), lambda n: (n, 0, 0))
        dim_sem = ("parallel",)

    out3 = pl.pallas_call(
        kernel,
        out_shape=jax.ShapeDtypeStruct((N, Cout, HW), out_dtype),
        grid_spec=pltpu.PrefetchScalarGridSpec(
            num_scalar_prefetch=0,
            grid=grid,
            in_specs=in_specs,
            out_specs=out_specs,
        ),
        compiler_params=pltpu.CompilerParams(dimension_semantics=dim_sem),
    )(x3, w_mat, b_col)

    return out3.reshape(N, Cout, H, W)


def _reference(x, w_sem, b_sem, w_ins, b_ins, panoptic=True):
    Cin = x.shape[1]
    scale = 1.0 / math.sqrt(Cin)
    if panoptic:
        w_all = jnp.concatenate([w_sem, w_ins], axis=0)[:, :, 0, 0] * scale
        b_all = jnp.concatenate([b_sem, b_ins], axis=0)
    else:
        w_all = w_sem[:, :, 0, 0] * scale
        b_all = b_sem
    return jnp.einsum('nchw,oc->nohw', x, w_all) + b_all[None, :, None, None]


if __name__ == "__main__":
    # Synthetic "opt" consistent with the module:
    #   num_semantics=5, things_stuff=True -> out_semantics=6
    #   panoptic=True, instance_type = {'density','center_offset','edge'},
    #   num_things=4 -> out_ins = 4 + 3 + 1 = 8
    N, Cin, H, W = 2, 8, 16, 16
    out_sem, out_ins = 6, 8

    key = jax.random.PRNGKey(0)
    k_x, k_ws, k_bs, k_wi, k_bi, k_x2 = jax.random.split(key, 6)

    x = jax.random.normal(k_x, (N, Cin, H, W), dtype=jnp.float32)
    w_sem = jax.random.normal(k_ws, (out_sem, Cin, 1, 1), dtype=jnp.float32)
    b_sem = 0.1 * jax.random.normal(k_bs, (out_sem,), dtype=jnp.float32)
    w_ins = jax.random.normal(k_wi, (out_ins, Cin, 1, 1), dtype=jnp.float32)
    b_ins = 0.1 * jax.random.normal(k_bi, (out_ins,), dtype=jnp.float32)

    # 1) Small-feature-map path (images packed per step / split across TCs).
    y = mask_forward(x, w_sem, b_sem, w_ins, b_ins, panoptic=True)
    jax.block_until_ready(y)
    ref = _reference(x, w_sem, b_sem, w_ins, b_ins)
    assert y.shape == (N, out_sem + out_ins, H, W)
    assert jnp.allclose(y, ref, atol=1e-4, rtol=1e-4)

    # 2) Pixel-tiled path with a ragged last block (H*W not a multiple of 128,
    #    no wrapper pad / slice).
    H2, W2 = 40, 37
    x2 = jax.random.normal(k_x2, (1, Cin, H2, W2), dtype=jnp.float32)
    y2 = mask_forward(x2, w_sem, b_sem, w_ins, b_ins, panoptic=True, tile_hw=512)
    jax.block_until_ready(y2)
    ref2 = _reference(x2, w_sem, b_sem, w_ins, b_ins)
    assert y2.shape == (1, out_sem + out_ins, H2, W2)
    assert jnp.allclose(y2, ref2, atol=1e-4, rtol=1e-4)

    # 3) bf16 output dtype (halves the dominant HBM write stream); f32 accumulate.
    y3 = mask_forward(x, w_sem, b_sem, w_ins, b_ins, panoptic=True,
                      out_dtype=jnp.bfloat16)
    jax.block_until_ready(y3)
    assert y3.dtype == jnp.bfloat16
    assert jnp.allclose(y3.astype(jnp.float32), ref, atol=5e-2, rtol=5e-2)

    print("KERNEL_OK")
</pallas_src>

<mosaic_0001>
module attributes {stable_mosaic.version = 11 : i64} {
  func.func @_mask_kernel_2d(%arg0: i32, %arg1: i32, %arg2: memref<1x8x256xf32, #tpu.memory_space<vmem>>, %arg3: memref<14x8xf32, #tpu.memory_space<vmem>>, %arg4: memref<14x1xf32, #tpu.memory_space<vmem>>, %arg5: memref<1x14x256xf32, #tpu.memory_space<vmem>>) attributes {dimension_semantics = [#tpu.dimension_semantics<parallel>, #tpu.dimension_semantics<parallel>], iteration_bounds = array<i64: 2, 1>, scalar_prefetch = 0 : i64, scratch_operands = 0 : i64, tpu.core_type = #tpu.core_type<tc>, window_params = [{transform_indices = @transform_0, window_bounds = array<i64: 1, 8, 256>}, {pipeline_mode = #tpu.pipeline_mode<synchronous>, transform_indices = @transform_1, window_bounds = array<i64: 14, 8>}, {pipeline_mode = #tpu.pipeline_mode<synchronous>, transform_indices = @transform_2, window_bounds = array<i64: 14, 1>}, {transform_indices = @transform_3, window_bounds = array<i64: 1, 14, 256>}]} {
    %c0 = arith.constant 0 : index
    %c0_0 = arith.constant 0 : index
    %c0_1 = arith.constant 0 : index
    %0 = vector.load %arg2[%c0, %c0_0, %c0_1] : memref<1x8x256xf32, #tpu.memory_space<vmem>>, vector<1x8x256xf32>
    %1 = vector.shape_cast %0 : vector<1x8x256xf32> to vector<8x256xf32>
    %c0_2 = arith.constant 0 : index
    %c0_3 = arith.constant 0 : index
    %2 = vector.load %arg3[%c0_2, %c0_3] : memref<14x8xf32, #tpu.memory_space<vmem>>, vector<14x8xf32>
    %cst = arith.constant dense<0.000000e+00> : vector<14x256xf32>
    %3 = tpu.matmul %2, %1, %cst {dimension_numbers = #tpu.dot_dimension_numbers<[1], [0], [0], [1], [0, 0, 1, 1], [], []>} : vector<14x8xf32>, vector<8x256xf32>, vector<14x256xf32> -> vector<14x256xf32>
    %c0_4 = arith.constant 0 : index
    %c0_5 = arith.constant 0 : index
    %4 = vector.load %arg4[%c0_4, %c0_5] : memref<14x1xf32, #tpu.memory_space<vmem>>, vector<14x1xf32>
    %5 = vector.broadcast %4 : vector<14x1xf32> to vector<14x256xf32>
    %6 = arith.addf %3, %5 : vector<14x256xf32>
    %c0_6 = arith.constant 0 : index
    %c0_7 = arith.constant 0 : index
    %c0_8 = arith.constant 0 : index
    %7 = vector.load %arg5[%c0_6, %c0_7, %c0_8] : memref<1x14x256xf32, #tpu.memory_space<vmem>>, vector<1x14x256xf32>
    %8 = vector.shape_cast %7 : vector<1x14x256xf32> to vector<14x256xf32>
    %9 = vector.shape_cast %6 : vector<14x256xf32> to vector<1x14x256xf32>
    tpu.vector_store %arg5[%c0_6, %c0_7, %c0_8], %9 {strides = array<i32>} : memref<1x14x256xf32, #tpu.memory_space<vmem>>, vector<1x14x256xf32>,
    return
  }
  func.func @transform_0(%arg0: i32, %arg1: i32) -> (i32, i32, i32) {
    %c0_i32 = arith.constant 0 : i32
    %c0_i32_0 = arith.constant 0 : i32
    return %arg0, %c0_i32, %arg1 : i32, i32, i32
  }
  func.func @transform_1(%arg0: i32, %arg1: i32) -> (i32, i32) {
    %c0_i32 = arith.constant 0 : i32
    %c0_i32_0 = arith.constant 0 : i32
    %c0_i32_1 = arith.constant 0 : i32
    return %c0_i32, %c0_i32_0 : i32, i32
  }
  func.func @transform_2(%arg0: i32, %arg1: i32) -> (i32, i32) {
    %c0_i32 = arith.constant 0 : i32
    %c0_i32_0 = arith.constant 0 : i32
    %c0_i32_1 = arith.constant 0 : i32
    return %c0_i32, %c0_i32_0 : i32, i32
  }
  func.func @transform_3(%arg0: i32, %arg1: i32) -> (i32, i32, i32) {
    %c0_i32 = arith.constant 0 : i32
    %c0_i32_0 = arith.constant 0 : i32
    return %arg0, %c0_i32, %arg1 : i32, i32, i32
  }
}

</mosaic_0001>

<llo_original>
// kernel: tpu_custom_call.1
$region0: #{tpu_custom_call.1}
  #allocation0 [shape = 'u32[]', space=smem, size = 0x4, offset = 0x4, fixed_abs, tag = 'smem constant byte address 0x4 - core index']
  #allocation1 [shape = 'u32[72,128]{1,0:T(1,128)}', space=vmem, size = 0x9000, scoped, tag = 'internal scratch']
  %s0 = inlined_call_operand.vmem [shape: f32[2,8,256], index: 0, kind: input, shape index: {}]
  %s1 = inlined_call_operand.vmem [shape: f32[14,8], index: 1, kind: input, shape index: {}]
  %s2 = inlined_call_operand.vmem [shape: f32[14,1], index: 2, kind: input, shape index: {}]
  %s3 = inlined_call_operand.vmem [shape: f32[2,14,256], index: 3, kind: output, shape index: {}]
  %s4 = sld [smem:[#allocation0]]
  $region45: #{tpu_custom_call.1} parent=0
    _
  %s6 = ssub.s32 1, %s4
  %s7 = scalar_select 0, %s6, %s4
  loop: start=0, step=1, limit=4
  $region2: #{tpu_custom_call.1} parent=0 // loop_pre_header
    _
  $region3: #{tpu_custom_call.1} parent=0 // loop_header
    %s9 = sphi 0, %s13
    %p10 = scmp.ge.s32.totalorder %s9, 4
    %s16 = sphi 0, %s28
    %s17 = sphi 0, %s24
    %s18 = sphi 0, %s16
    %s19 = sphi 0, %s17
    %s20 = sphi 0, %s18
    %s21 = sphi 0, %s19
    %s33 = sphi 0, %s35
    %s36 = sphi 0, %s33
    %s37 = sphi 0, %s36
    %s53 = sphi 0, %s37
    %s57 = sphi 0, %s57
    %s59 = sphi 0, %s57
    %s60 = sphi 0, %s59
    %s74 = sphi 0, %s60
    %s78 = sphi 0, %s78
    %s80 = sphi 0, %s78
    %s81 = sphi 0, %s80
    %s95 = sphi 0, %s81
    %s103 = sphi 0, %s105
    %s106 = sphi 0, %s103
    %s107 = sphi 0, %s106
    %s123 = sphi 0, %s107
  $region4: #{tpu_custom_call.1} parent=0 // loop_header_branch
    %12 = sbr.rel (%p10) target = $region8
  $region5: #{tpu_custom_call.1} parent=0 // loop_body
    %s14 = ssub.s32 %s9, 1
    %s15 = ssub.s32 %s9, 2
    %s22 = sadd.s32 1, %s17
    %p23 = scmp.ge.s32.totalorder %s22, 1
    %s24 = scalar_select %p23, 0, %s22
    %s25 = sadd.s32 1, %s16
    %s26 = scalar_select %p23, %s25, %s16
    %p27 = scmp.ge.s32.totalorder %s26, 2
    %s28 = scalar_select %p27, 0, %s26
    %s29 = ssub.s32 %s16, %s28
    %s30 = ssub.s32 %s17, %s24
    %s31 = sor.u32 %s29, %s30
    %p32 = scmp.eq.s32.totalorder %s31, 0
    %s34 = sadd.s32 %s33, 1
    %s35 = scalar_select %p32, %s33, %s34
    %p38 = pneg %p32
    %p39 = scmp.eq.s32.totalorder %s9, 1
    %p40 = por %p38, %p39
    %p41 = scmp.ne.s32.totalorder %s33, %s36
    %p42 = scmp.eq.s32.totalorder %s9, 0
    %p43 = por %p41, %p42
    %p44 = scmp.ne.s32.totalorder %s33, %s36
    %p45 = scmp.eq.s32.totalorder %s14, 1
    %p46 = por %p44, %p45
    %p47 = scmp.ne.s32.totalorder %s36, %s37
    %p48 = scmp.eq.s32.totalorder %s14, 0
    %p49 = por %p47, %p48
    %p50 = scmp.ne.s32.totalorder %s36, %s37
    %p51 = scmp.eq.s32.totalorder %s15, 1
    %p52 = por %p50, %p51
    %p54 = scmp.ne.s32.totalorder %s37, %s53
    %p55 = scmp.eq.s32.totalorder %s15, 0
    %p56 = por %p54, %p55
    %s58 = sadd.s32 %s57, 1
    %p61 = scmp.eq.s32.totalorder %s9, 1
    %p62 = scmp.ne.s32.totalorder %s57, %s59
    %p63 = scmp.eq.s32.totalorder %s9, 0
    %p64 = por %p62, %p63
    %p65 = scmp.ne.s32.totalorder %s57, %s59
    %p66 = scmp.eq.s32.totalorder %s14, 1
    %p67 = por %p65, %p66
    %p68 = scmp.ne.s32.totalorder %s59, %s60
    %p69 = scmp.eq.s32.totalorder %s14, 0
    %p70 = por %p68, %p69
    %p71 = scmp.ne.s32.totalorder %s59, %s60
    %p72 = scmp.eq.s32.totalorder %s15, 1
    %p73 = por %p71, %p72
    %p75 = scmp.ne.s32.totalorder %s60, %s74
    %p76 = scmp.eq.s32.totalorder %s15, 0
    %p77 = por %p75, %p76
    %s79 = sadd.s32 %s78, 1
    %p82 = scmp.eq.s32.totalorder %s9, 1
    %p83 = scmp.ne.s32.totalorder %s78, %s80
    %p84 = scmp.eq.s32.totalorder %s9, 0
    %p85 = por %p83, %p84
    %p86 = scmp.ne.s32.totalorder %s78, %s80
    %p87 = scmp.eq.s32.totalorder %s14, 1
    %p88 = por %p86, %p87
    %p89 = scmp.ne.s32.totalorder %s80, %s81
    %p90 = scmp.eq.s32.totalorder %s14, 0
    %p91 = por %p89, %p90
    %p92 = scmp.ne.s32.totalorder %s80, %s81
    %p93 = scmp.eq.s32.totalorder %s15, 1
    %p94 = por %p92, %p93
    %p96 = scmp.ne.s32.totalorder %s81, %s95
    %p97 = scmp.eq.s32.totalorder %s15, 0
    %p98 = por %p96, %p97
    %s99 = ssub.s32 %s16, %s28
    %s100 = ssub.s32 %s17, %s24
    %s101 = sor.u32 %s99, %s100
    %p102 = scmp.eq.s32.totalorder %s101, 0
    %s104 = sadd.s32 %s103, 1
    %s105 = scalar_select %p102, %s103, %s104
    %p108 = pneg %p102
    %p109 = scmp.eq.s32.totalorder %s9, 1
    %p110 = por %p108, %p109
    %p111 = scmp.ne.s32.totalorder %s103, %s106
    %p112 = scmp.eq.s32.totalorder %s9, 0
    %p113 = por %p111, %p112
    %p114 = scmp.ne.s32.totalorder %s103, %s106
    %p115 = scmp.eq.s32.totalorder %s14, 1
    %p116 = por %p114, %p115
    %p117 = scmp.ne.s32.totalorder %s106, %s107
    %p118 = scmp.eq.s32.totalorder %s14, 0
    %p119 = por %p117, %p118
    %p120 = scmp.ne.s32.totalorder %s106, %s107
    %p121 = scmp.eq.s32.totalorder %s15, 1
    %p122 = por %p120, %p121
    %p124 = scmp.ne.s32.totalorder %s107, %s123
    %p125 = scmp.eq.s32.totalorder %s15, 0
    %p126 = por %p124, %p125
    %p127 = scmp.le.s32.totalorder 1, %s9
    %p128 = scmp.lt.s32.totalorder %s9, 3
    %p129 = pnand %p127, %p128
    %p130 = pneg %p129
    // Predicated region
    $region9: #{tpu_custom_call.1} parent=5 // pred_check
      _
    $region10: #{tpu_custom_call.1} parent=5 // pred_check_branch
      %132 = sbr.rel (%p129) target = $region12
    $region11: #{tpu_custom_call.1} parent=5 // pred_region
      %s133 = ssub.s32 %s9, 1
      // Predicated region
      $region13: #{tpu_custom_call.1} parent=11 // pred_check
        %p134 = pneg %p70
      $region14: #{tpu_custom_call.1} parent=11 // pred_check_branch
        %136 = sbr.rel (%p134) target = $region16
      $region15: #{tpu_custom_call.1} parent=11 // pred_region
        _
      $region16: #{tpu_custom_call.1} parent=11 // pred_fallthru
        _
      // Predicated region
      $region17: #{tpu_custom_call.1} parent=11 // pred_check
        %p137 = pneg %p91
      $region18: #{tpu_custom_call.1} parent=11 // pred_check_branch
        %139 = sbr.rel (%p137) target = $region20
      $region19: #{tpu_custom_call.1} parent=11 // pred_region
        _
      $region20: #{tpu_custom_call.1} parent=11 // pred_fallthru
        _
    $region12: #{tpu_custom_call.1} parent=5 // pred_fallthru
      _
    %p140 = scmp.lt.s32.totalorder %s9, 2
    // Predicated region
    $region21: #{tpu_custom_call.1} parent=5 // pred_check
      %p141 = pneg %p140
    $region22: #{tpu_custom_call.1} parent=5 // pred_check_branch
      %143 = sbr.rel (%p141) target = $region24
    $region23: #{tpu_custom_call.1} parent=5 // pred_region
      // Predicated region
      $region25: #{tpu_custom_call.1} parent=23 // pred_check
        %p144 = pneg %p43
      $region26: #{tpu_custom_call.1} parent=23 // pred_check_branch
        %146 = sbr.rel (%p144) target = $region28
      $region27: #{tpu_custom_call.1} parent=23 // pred_region
        %s147 = smul.u32 2, %s17
        %p148 = scmp.lt.s32.totalorder %s16, 1
        %s149 = scalar_select %p148, %s16, 1
        %p150 = scmp.lt.s32.totalorder %s147, 1
        %s151 = scalar_select %p150, %s147, 1
        %s152 = smul.addr %s149, 2
        %s153 = sadd.s32 %s151, %s152
        %s154 = smul.addr %s153, 8
        %s155 = scalar_lea.vmem %s0, %s154
        %s156 = smul.u32 2, %s17
      $region28: #{tpu_custom_call.1} parent=23 // pred_fallthru
        _
    $region24: #{tpu_custom_call.1} parent=5 // pred_fallthru
      _
    %p157 = scmp.le.s32.totalorder 1, %s9
    %p158 = scmp.lt.s32.totalorder %s9, 3
    %p159 = pnand %p157, %p158
    %p160 = pneg %p159
    // Predicated region
    $region29: #{tpu_custom_call.1} parent=5 // pred_check
      _
    $region30: #{tpu_custom_call.1} parent=5 // pred_check_branch
      %162 = sbr.rel (%p159) target = $region32
    $region31: #{tpu_custom_call.1} parent=5 // pred_region
      %s163 = ssub.s32 %s9, 1
      %s164 = smul.u32 2, %s19
      %p165 = scmp.lt.s32.totalorder %s18, 1
      %s166 = scalar_select %p165, %s18, 1
      %p167 = scmp.lt.s32.totalorder %s164, 1
      %s168 = scalar_select %p167, %s164, 1
      %s169 = smul.addr %s166, 2
      %s170 = sadd.s32 %s168, %s169
      %s171 = smul.addr %s170, 8
      %s172 = scalar_lea.vmem %s0, %s171
      %p173 = pneg %p49
      %p174 = pneg %p46
      %p175 = pneg %p70
      %p176 = pneg %p67
      %p177 = pneg %p91
      %p178 = pneg %p88
      %p179 = pneg %p119
      %p180 = pneg %p116
      %s181 = smul.u32 2, %s19
      %p182 = scmp.lt.s32.totalorder %s18, 1
      %s183 = scalar_select %p182, %s18, 1
      %p184 = scmp.lt.s32.totalorder %s181, 1
      %s185 = scalar_select %p184, %s181, 1
      %s186 = smul.addr %s183, 4
      %s187 = sadd.s32 %s185, %s186
      %s188 = smul.addr %s187, 8
      %s189 = scalar_lea.vmem %s3, %s188
      %s190 = smul.u32 2, %s19
      %p191 = scmp.lt.s32.totalorder %s18, 1
      %s192 = scalar_select %p191, %s18, 1
      %p193 = scmp.lt.s32.totalorder %s190, 1
      %s194 = scalar_select %p193, %s190, 1
      %s195 = smul.addr %s192, 2
      %s196 = sadd.s32 %s194, %s195
      %s197 = smul.addr %s196, 8
      %s198 = scalar_lea.vmem %s0, %s197
      %s199 = smul.u32 2, %s19
      %s200 = smul.u32 2, %s19
      %p201 = scmp.lt.s32.totalorder %s18, 1
      %s202 = scalar_select %p201, %s18, 1
      %p203 = scmp.lt.s32.totalorder %s200, 1
      %s204 = scalar_select %p203, %s200, 1
      %s205 = smul.addr %s202, 4
      %s206 = sadd.s32 %s204, %s205
      %s207 = smul.addr %s206, 8
      %s208 = scalar_lea.vmem %s3, %s207
      %s209 = smul.u32 2, %s19
      %v210 = vld [vmem:[%s198] sm:$0xff]
      %v211 = vld [vmem:[%s198 + $0x8] sm:$0xff]
      %v212 = vld [vmem:[%s1] sm:$0xff]
      %v213 = vld [vmem:[%s1 + $0x8] sm:$0x3f]
      %v214 = vld [vmem:[%s2] sm:$0xff]
      %v215 = vld [vmem:[%s2 + $0x8] sm:$0x3f]
      %217 = vset.pattern.permute.xlu0 0
      %218 = vperm.xlu0 %217, %v214
      %v219 = vpop.permute.xlu0 %218
      %222 = vset.pattern.permute.xlu0 0
      %223 = vperm.xlu0 %222, %v215
      %v224 = vpop.permute.xlu0 %223
      %vm226 = vcmask 64512
      %v228 = vsel %vm226, %v212, 0
      %v231 = vsel %vm226, %v213, 0
      %233 = vmatpush.msra.mxu0 0.0
      %234 = vmatpush.msra.mxu0 0.0
      %235 = vmatpush.msra.mxu0 0.0
      %236 = vmatpush.msra.mxu0 0.0
      %237 = vmatpush.msra.mxu0 0.0
      %238 = vmatpush.msra.mxu0 0.0
      %239 = vmatpush.msra.mxu0 0.0
      %240 = vmatpush.msra.mxu0 0.0
      %241 = vmatpush.msra.mxu0 0.0
      %242 = vmatpush.msra.mxu0 0.0
      %243 = vmatpush.msra.mxu0 0.0
      %244 = vmatpush.msra.mxu0 0.0
      %245 = vmatpush.msra.mxu0 0.0
      %246 = vmatpush.msra.mxu0 0.0
      %247 = vmatpush.msra.mxu0 0.0
      %248 = vmatpush.msra.mxu0 %v210
      %249 = vmatmul.f32.gmra.mxu0 %v228
      %v250 = vpop.f32.mrf.mxu0
      %v251 = vadd.f32 %v219, %v250
      %252 = vmatmul.f32.gmra.mxu0 %v231
      %v253 = vpop.f32.mrf.mxu0
      %v254 = vadd.f32 %v224, %v253
      %255 = vdwg.mxu0
      %256 = vmatpush.msra.mxu0 0.0
      %257 = vmatpush.msra.mxu0 0.0
      %258 = vmatpush.msra.mxu0 0.0
      %259 = vmatpush.msra.mxu0 0.0
      %260 = vmatpush.msra.mxu0 0.0
      %261 = vmatpush.msra.mxu0 0.0
      %262 = vmatpush.msra.mxu0 0.0
      %263 = vmatpush.msra.mxu0 0.0
      %264 = vmatpush.msra.mxu0 0.0
      %265 = vmatpush.msra.mxu0 0.0
      %266 = vmatpush.msra.mxu0 0.0
      %267 = vmatpush.msra.mxu0 0.0
      %268 = vmatpush.msra.mxu0 0.0
      %269 = vmatpush.msra.mxu0 0.0
      %270 = vmatpush.msra.mxu0 0.0
      %271 = vmatpush.msra.mxu0 %v211
      %272 = vmatmul.f32.gmra.mxu0 %v228
      %v273 = vpop.f32.mrf.mxu0
      %v274 = vadd.f32 %v219, %v273
      %275 = vmatmul.f32.gmra.mxu0 %v231
      %v276 = vpop.f32.mrf.mxu0
      %v277 = vadd.f32 %v224, %v276
      %278 = vdwg.mxu0
      %279 = vst [vmem:[%s208] sm:$0xff] %v251
      %280 = vst [vmem:[%s208 + $0x8] sm:$0xff] %v274
      %281 = vst [vmem:[%s208 + $0x10] sm:$0x3f] %v254
      %282 = vst [vmem:[%s208 + $0x18] sm:$0x3f] %v277
      %s283 = smul.u32 2, %s19
      %p284 = scmp.lt.s32.totalorder %s18, 1
      %s285 = scalar_select %p284, %s18, 1
      %p286 = scmp.lt.s32.totalorder %s283, 1
      %s287 = scalar_select %p286, %s283, 1
      %s288 = smul.addr %s285, 4
      %s289 = sadd.s32 %s287, %s288
      %s290 = smul.addr %s289, 8
      %s291 = scalar_lea.vmem %s3, %s290
      // Predicated region
      $region33: #{tpu_custom_call.1} parent=31 // pred_check
        %p292 = pneg %p116
      $region34: #{tpu_custom_call.1} parent=31 // pred_check_branch
        %294 = sbr.rel (%p292) target = $region36
      $region35: #{tpu_custom_call.1} parent=31 // pred_region
        %s295 = smul.u32 2, %s19
      $region36: #{tpu_custom_call.1} parent=31 // pred_fallthru
        _
    $region32: #{tpu_custom_call.1} parent=5 // pred_fallthru
      _
    %p296 = scmp.le.s32.totalorder 2, %s9
    // Predicated region
    $region37: #{tpu_custom_call.1} parent=5 // pred_check
      %p297 = pneg %p296
    $region38: #{tpu_custom_call.1} parent=5 // pred_check_branch
      %299 = sbr.rel (%p297) target = $region40
    $region39: #{tpu_custom_call.1} parent=5 // pred_region
      %s300 = ssub.s32 %s9, 2
      // Predicated region
      $region41: #{tpu_custom_call.1} parent=39 // pred_check
        %p301 = pneg %p122
      $region42: #{tpu_custom_call.1} parent=39 // pred_check_branch
        %303 = sbr.rel (%p301) target = $region44
      $region43: #{tpu_custom_call.1} parent=39 // pred_region
        %s304 = smul.u32 2, %s21
        %p305 = scmp.lt.s32.totalorder %s20, 1
        %s306 = scalar_select %p305, %s20, 1
        %p307 = scmp.lt.s32.totalorder %s304, 1
        %s308 = scalar_select %p307, %s304, 1
        %s309 = smul.addr %s306, 4
        %s310 = sadd.s32 %s308, %s309
        %s311 = smul.addr %s310, 8
        %s312 = scalar_lea.vmem %s3, %s311
      $region44: #{tpu_custom_call.1} parent=39 // pred_fallthru
        _
    $region40: #{tpu_custom_call.1} parent=5 // pred_fallthru
      _
  $region6: #{tpu_custom_call.1} parent=0 // loop_footer
    %s13 = sadd.s32 1, %s9
  $region7: #{tpu_custom_call.1} parent=0 // loop_footer_branch
    %8 = sbr.rel target = $region3
  $region8: #{tpu_custom_call.1} parent=0 // loop_exit
    _

</llo_original>
